<compile_context>
chip_gen: v5e
topology: v5e:2x2
jax: 0.10.0
libtpu: 0.0.40
codegen_flags: <defaults>
</compile_context>

<pallas_src>
import math

import jax
import jax.numpy as jnp
from jax.experimental import pallas as pl
from jax.experimental.pallas import tpu as pltpu


def _affine_kernel(x_ref, w_ref, b_ref, o_ref):
    # x_ref: (tile_rows, tile_h); w_ref / b_ref: (1, tile_h) broadcast over rows.
    o_ref[...] = (x_ref[...] * w_ref[...] + b_ref[...]).astype(o_ref.dtype)


def _round_down(x, m):
    return max(m, (x // m) * m)


def _round_up(x, m):
    return ((x + m - 1) // m) * m


def _tpu_generation():
    try:
        kind = (getattr(jax.devices()[0], "device_kind", "") or "").lower()
    except Exception:
        kind = ""
    for tag, gen in (("v7", 7), ("7x", 7), ("v6", 6), ("v5", 5), ("v4", 4)):
        if tag in kind:
            return gen
    return 0


def _budgets():
    """(target_block_bytes, vmem_limit_bytes, min_row_blocks) per generation."""
    gen = _tpu_generation()
    if gen >= 7:
        # 3.2 TB/s HBM: amortize the ~0.35us/step grid overhead with ~10 MiB
        # blocks (4 double-buffered in/out blocks ~= 40 MiB < 48 MiB limit
        # < 64 MiB physical). Two TensorCores -> want >= 4 parallel row blocks.
        return 10 * 1024 * 1024, 48 * 1024 * 1024, 4
    if gen == 6:
        # Already ~85% of roofline at 4 MiB; 8 MiB buys the last couple %.
        return 8 * 1024 * 1024, 48 * 1024 * 1024, 1
    # v5e / unknown: 4 MiB blocks sit at the roofline; v5e's scoped default is
    # only 16 MiB so the explicit 32 MiB limit matters.
    return 4 * 1024 * 1024, 32 * 1024 * 1024, 1


def affine(x, weight, bias):
    """out = x * weight + bias, broadcasting weight/bias over leading dims."""
    orig_shape = x.shape
    hidden = orig_shape[-1]
    assert weight.shape == (hidden,) and bias.shape == (hidden,)

    target_block_bytes, vmem_limit_bytes, min_row_blocks = _budgets()

    x2d = x.reshape(-1, hidden)
    rows = x2d.shape[0]
    # Cast params once in the wrapper: avoids per-element promotion (e.g. bf16
    # x with f32 params) inside the kernel.
    w = weight.astype(x.dtype)
    b = bias.astype(x.dtype)

    # --- Lane packing: if hidden isn't a multiple of 128, fold k rows into one
    # so the last dim becomes lane-dense (unmasked vst, contiguous DMA). Pure
    # reshape of x (no extra HBM pass) + a tiny jnp.tile of weight/bias.
    pack = 1
    if hidden % 128 != 0:
        k = 128 // math.gcd(hidden, 128)
        if k > 1:
            if rows % k == 0:
                pack = k
            else:
                # Ragged row count: pack by the largest divisor we get for free
                # (still a pure reshape); padded-width sizing below keeps the
                # residual fallback VMEM-safe.
                # TODO(synk): fully lane-dense split (packed main + tiny
                # remainder call) needs extra HBM copies in eager mode.
                g = math.gcd(rows, k)
                if g > 1:
                    pack = g
    if pack > 1:
        x2d = x2d.reshape(rows // pack, pack * hidden)
        w = jnp.tile(w, pack)
        b = jnp.tile(b, pack)

    p_rows, p_hidden = x2d.shape
    w2d = w.reshape(1, p_hidden)
    b2d = b.reshape(1, p_hidden)

    itemsize = jnp.dtype(x.dtype).itemsize
    # Sublane multiple for packed dtypes: f32 -> 8, bf16 -> 16, int8/fp8 -> 32.
    sub = 8 * max(1, 4 // itemsize)

    # --- Hidden tile: keep a full row per block whenever it fits the byte
    # budget with >= `sub` rows (contiguous DMAs, 1-D grid); otherwise tile the
    # hidden dim in lane-dense 128-multiples.
    padded_full_h = _round_up(p_hidden, 128)
    if p_hidden <= 128 or sub * padded_full_h * itemsize <= target_block_bytes:
        tile_h = p_hidden
    else:
        tile_h = _round_down(target_block_bytes // (sub * itemsize), 128)
        if tile_h >= p_hidden:
            tile_h = p_hidden
    padded_tile_h = _round_up(tile_h, 128)

    # --- Row tile: budget in bytes against the lane-PADDED width so the
    # small-hidden fallback cannot overshoot VMEM; double-buffered in+out
    # blocks (~4 x block) stay under vmem_limit_bytes on every generation.
    max_rows = max(sub, _round_down(target_block_bytes // (padded_tile_h * itemsize), sub))
    if p_rows > max_rows:
        tile_rows = max_rows                      # partial last block handled by Pallas
    else:
        tile_rows = p_rows                        # single full-extent row block (legal)
        if min_row_blocks > 1:
            # v7x: guarantee several parallel row blocks so both TCs get work.
            if p_rows >= min_row_blocks * sub:
                tile_rows = _round_up(pl.cdiv(p_rows, min_row_blocks), sub)
            elif p_rows >= 2 * sub:
                tile_rows = _round_up(pl.cdiv(p_rows, 2), sub)

    n_rows = pl.cdiv(p_rows, tile_rows)
    n_h = pl.cdiv(p_hidden, tile_h)

    x_shape = (tile_rows, tile_h)
    wb_shape = (1, tile_h)
    if n_h == 1:
        grid = (n_rows,)
        in_specs = [
            pl.BlockSpec(x_shape, lambda i: (i, 0)),
            pl.BlockSpec(wb_shape, lambda i: (0, 0)),
            pl.BlockSpec(wb_shape, lambda i: (0, 0)),
        ]
        out_specs = pl.BlockSpec(x_shape, lambda i: (i, 0))
        dims = ("parallel",)
    else:
        # Hidden axis outermost: weight/bias block indices are constant across
        # the inner (row) steps, so Pallas skips re-DMAing them.
        grid = (n_h, n_rows)
        in_specs = [
            pl.BlockSpec(x_shape, lambda h, i: (i, h)),
            pl.BlockSpec(wb_shape, lambda h, i: (0, h)),
            pl.BlockSpec(wb_shape, lambda h, i: (0, h)),
        ]
        out_specs = pl.BlockSpec(x_shape, lambda h, i: (i, h))
        dims = ("parallel", "parallel")

    cost = pl.CostEstimate(
        flops=2 * x.size,
        transcendentals=0,
        bytes_accessed=(2 * x2d.size * itemsize
                        + w2d.size * jnp.dtype(w2d.dtype).itemsize
                        + b2d.size * jnp.dtype(b2d.dtype).itemsize),
    )

    out = pl.pallas_call(
        _affine_kernel,
        out_shape=jax.ShapeDtypeStruct((p_rows, p_hidden), x.dtype),
        grid_spec=pltpu.PrefetchScalarGridSpec(
            num_scalar_prefetch=0,
            grid=grid,
            in_specs=in_specs,
            out_specs=out_specs,
        ),
        compiler_params=pltpu.CompilerParams(
            dimension_semantics=dims,
            vmem_limit_bytes=vmem_limit_bytes,
        ),
        cost_estimate=cost,
    )(x2d, w2d, b2d)

    if pack > 1:
        out = out.reshape(rows, hidden)
    return out.reshape(orig_shape)


if __name__ == "__main__":
    key = jax.random.PRNGKey(0)
    batch, seq, hidden = 2, 8, 32

    # Matches Affine(weight=2.0, bias=0.5, input_size=hidden)
    weight_fill, bias_fill = 2.0, 0.5
    weight = jnp.full((hidden,), weight_fill, dtype=jnp.float32)
    bias = jnp.full((hidden,), bias_fill, dtype=jnp.float32)

    x = jax.random.normal(key, (batch, seq, hidden), dtype=jnp.float32)

    out = affine(x, weight, bias)
    out = jax.block_until_ready(out)

    ref = x * weight + bias
    assert out.shape == x.shape
    assert jnp.allclose(out, ref, atol=1e-6), "mismatch vs reference"
    print("KERNEL_OK")
</pallas_src>

<mosaic_0001>
module attributes {stable_mosaic.version = 11 : i64} {
  func.func @_affine_kernel(%arg0: i32, %arg1: memref<4x128xf32, #tpu.memory_space<vmem>>, %arg2: memref<1x128xf32, #tpu.memory_space<vmem>>, %arg3: memref<1x128xf32, #tpu.memory_space<vmem>>, %arg4: memref<4x128xf32, #tpu.memory_space<vmem>>) attributes {dimension_semantics = [#tpu.dimension_semantics<parallel>], iteration_bounds = array<i64: 1>, scalar_prefetch = 0 : i64, scratch_operands = 0 : i64, tpu.core_type = #tpu.core_type<tc>, window_params = [{transform_indices = @transform_0, window_bounds = array<i64: 4, 128>}, {pipeline_mode = #tpu.pipeline_mode<synchronous>, transform_indices = @transform_1, window_bounds = array<i64: 1, 128>}, {pipeline_mode = #tpu.pipeline_mode<synchronous>, transform_indices = @transform_2, window_bounds = array<i64: 1, 128>}, {transform_indices = @transform_3, window_bounds = array<i64: 4, 128>}]} {
    %c0 = arith.constant 0 : index
    %c0_0 = arith.constant 0 : index
    %0 = vector.load %arg1[%c0, %c0_0] : memref<4x128xf32, #tpu.memory_space<vmem>>, vector<4x128xf32>
    %c0_1 = arith.constant 0 : index
    %c0_2 = arith.constant 0 : index
    %1 = vector.load %arg2[%c0_1, %c0_2] : memref<1x128xf32, #tpu.memory_space<vmem>>, vector<1x128xf32>
    %2 = vector.broadcast %1 : vector<1x128xf32> to vector<4x128xf32>
    %3 = arith.mulf %0, %2 : vector<4x128xf32>
    %c0_3 = arith.constant 0 : index
    %c0_4 = arith.constant 0 : index
    %4 = vector.load %arg3[%c0_3, %c0_4] : memref<1x128xf32, #tpu.memory_space<vmem>>, vector<1x128xf32>
    %5 = vector.broadcast %4 : vector<1x128xf32> to vector<4x128xf32>
    %6 = arith.addf %3, %5 : vector<4x128xf32>
    %c0_5 = arith.constant 0 : index
    %c0_6 = arith.constant 0 : index
    %7 = vector.load %arg4[%c0_5, %c0_6] : memref<4x128xf32, #tpu.memory_space<vmem>>, vector<4x128xf32>
    tpu.vector_store %arg4[%c0_5, %c0_6], %6 {strides = array<i32>} : memref<4x128xf32, #tpu.memory_space<vmem>>, vector<4x128xf32>,
    return
  }
  func.func @transform_0(%arg0: i32) -> (i32, i32) {
    %c0_i32 = arith.constant 0 : i32
    %c0_i32_0 = arith.constant 0 : i32
    return %arg0, %c0_i32 : i32, i32
  }
  func.func @transform_1(%arg0: i32) -> (i32, i32) {
    %c0_i32 = arith.constant 0 : i32
    %c0_i32_0 = arith.constant 0 : i32
    %c0_i32_1 = arith.constant 0 : i32
    return %c0_i32, %c0_i32_0 : i32, i32
  }
  func.func @transform_2(%arg0: i32) -> (i32, i32) {
    %c0_i32 = arith.constant 0 : i32
    %c0_i32_0 = arith.constant 0 : i32
    %c0_i32_1 = arith.constant 0 : i32
    return %c0_i32, %c0_i32_0 : i32, i32
  }
  func.func @transform_3(%arg0: i32) -> (i32, i32) {
    %c0_i32 = arith.constant 0 : i32
    %c0_i32_0 = arith.constant 0 : i32
    return %arg0, %c0_i32 : i32, i32
  }
}

</mosaic_0001>

<llo_original>
// kernel: tpu_custom_call.1
$region0: #{tpu_custom_call.1}
  #allocation0 [shape = 'u32[]', space=smem, size = 0x4, offset = 0x4, fixed_abs, tag = 'smem constant byte address 0x4 - core index']
  #allocation1 [shape = 'u32[72,128]{1,0:T(1,128)}', space=vmem, size = 0x9000, scoped, tag = 'internal scratch']
  %s0 = inlined_call_operand.hbm [shape: f32[4,128], index: 0, kind: input, shape index: {}]
  %s1 = inlined_call_operand.hbm [shape: f32[1,128], index: 1, kind: input, shape index: {}]
  %s2 = inlined_call_operand.vmem [shape: f32[1,128], index: 2, kind: input, shape index: {}]
  %s3 = inlined_call_operand.hbm [shape: f32[4,128], index: 3, kind: output, shape index: {}]
  %s4 = sld [smem:[#allocation0]]
  $region30: #{tpu_custom_call.1} parent=0
    _
  %s6 = ssub.s32 1, %s4
  %s7 = scalar_select 0, %s6, %s4
  $region1: #{tpu_custom_call.1} parent=0
    #allocation2 [shape = 'u8[2048]{0}', space=vmem, size = 0x800, scoped, tag = 'input window, operand 0, single buffered']
    #allocation3 [shape = 's32[1]{0}', space=sflag, size = 0x4, scoped, tag = 'scoped memory for tpu_custom_call.1']
    #allocation4 [shape = 's32[1]{0}', space=sflag, size = 0x4, scoped, tag = 'scoped memory for tpu_custom_call.1']
    #allocation5 [shape = 'u8[512]{0}', space=vmem, size = 0x400, scoped, tag = 'input window, operand 1, single buffered']
    #allocation6 [shape = 's32[1]{0}', space=sflag, size = 0x4, scoped, tag = 'scoped memory for tpu_custom_call.1']
    #allocation7 [shape = 'u8[2048]{0}', space=vmem, size = 0x800, scoped, tag = 'output window, operand 0, single buffered']
    %8 = vsyncpa [#allocation3], 0
    %9 = vsyncpa [#allocation6], 0
    %10 = vsyncpa [#allocation4], 0
    // Predicated region
    $region2: #{tpu_custom_call.1} parent=1 // pred_check
      _
    $region3: #{tpu_custom_call.1} parent=1 // pred_check_branch
      %12 = sbr.rel (0) target = $region5
    $region4: #{tpu_custom_call.1} parent=1 // pred_region
      %14 = vsyncadd [#allocation3], 0
      %s16 = sshll.u32 %s0, 4
      %s17 = int_to_ptr.hbm [resolvable:$true] %s16
      %s18 = sshll.u32 [#allocation2], 4
      %s19 = int_to_ptr.vmem [resolvable:$true] %s18
      %21 = dma.hbm_to_vmem [thread:$0]  %s17, 64, %s19, [#allocation3]
    $region5: #{tpu_custom_call.1} parent=1 // pred_fallthru
      _
    // Predicated region
    $region6: #{tpu_custom_call.1} parent=1 // pred_check
      _
    $region7: #{tpu_custom_call.1} parent=1 // pred_check_branch
      %23 = sbr.rel (0) target = $region9
    $region8: #{tpu_custom_call.1} parent=1 // pred_region
      %25 = vsyncadd [#allocation6], 0
      %s27 = sshll.u32 %s1, 4
      %s28 = int_to_ptr.hbm [resolvable:$true] %s27
      %s29 = sshll.u32 [#allocation5], 4
      %s30 = int_to_ptr.vmem [resolvable:$true] %s29
      %32 = dma.hbm_to_vmem [thread:$0]  %s28, 16, %s30, [#allocation6]
    $region9: #{tpu_custom_call.1} parent=1 // pred_fallthru
      _
    // Predicated region
    $region10: #{tpu_custom_call.1} parent=1 // pred_check
      _
    $region11: #{tpu_custom_call.1} parent=1 // pred_check_branch
      %34 = sbr.rel (0) target = $region13
    $region12: #{tpu_custom_call.1} parent=1 // pred_region
      _
    $region13: #{tpu_custom_call.1} parent=1 // pred_fallthru
      _
    // Predicated region
    $region14: #{tpu_custom_call.1} parent=1 // pred_check
      _
    $region15: #{tpu_custom_call.1} parent=1 // pred_check_branch
      %36 = sbr.rel (0) target = $region17
    $region16: #{tpu_custom_call.1} parent=1 // pred_region
      %38 = dma.done [#allocation3], 64
    $region17: #{tpu_custom_call.1} parent=1 // pred_fallthru
      _
    // Predicated region
    $region18: #{tpu_custom_call.1} parent=1 // pred_check
      _
    $region19: #{tpu_custom_call.1} parent=1 // pred_check_branch
      %40 = sbr.rel (0) target = $region21
    $region20: #{tpu_custom_call.1} parent=1 // pred_region
      %42 = dma.done [#allocation6], 16
    $region21: #{tpu_custom_call.1} parent=1 // pred_fallthru
      _
    %v43 = vld [vmem:[#allocation2] sm:$0xf]
    %v44 = vld [vmem:[#allocation5] sm:$0x1]
    %v46 = vperm.slane %v44, 0
    %v48 = vmul.f32 %v43, %v46
    %v49 = vld [vmem:[%s2] sm:$0x1]
    %v51 = vperm.slane %v49, 0
    %v53 = vadd.f32 %v48, %v51
    %54 = vst [vmem:[#allocation7] sm:$0xf] %v53
    // Predicated region
    $region22: #{tpu_custom_call.1} parent=1 // pred_check
      _
    $region23: #{tpu_custom_call.1} parent=1 // pred_check_branch
      %56 = sbr.rel (0) target = $region25
    $region24: #{tpu_custom_call.1} parent=1 // pred_region
      %58 = vsyncadd [#allocation4], 0
      %s60 = sshll.u32 [#allocation7], 4
      %s61 = int_to_ptr.vmem [resolvable:$true] %s60
      %s62 = sshll.u32 %s3, 4
      %s63 = int_to_ptr.hbm [resolvable:$true] %s62
      %65 = dma.vmem_to_hbm [thread:$0]  %s61, 64, %s63, [#allocation4]
    $region25: #{tpu_custom_call.1} parent=1 // pred_fallthru
      _
    // Predicated region
    $region26: #{tpu_custom_call.1} parent=1 // pred_check
      _
    $region27: #{tpu_custom_call.1} parent=1 // pred_check_branch
      %67 = sbr.rel (0) target = $region29
    $region28: #{tpu_custom_call.1} parent=1 // pred_region
      %69 = dma.done [#allocation4], 64
    $region29: #{tpu_custom_call.1} parent=1 // pred_fallthru
      _
    %70 = vsyncpa [#allocation3], 1
    %71 = vsyncpa [#allocation6], 1
    %72 = vsyncpa [#allocation4], 1

</llo_original>
